<compile_context>
chip_gen: v7x
topology: tpu7x:2x2x1
jax: 0.10.0
libtpu: 0.0.40
codegen_flags: <defaults>
</compile_context>

<pallas_src>
import jax
import jax.numpy as jnp
from jax.experimental import pallas as pl
from jax.experimental.pallas import tpu as pltpu

_LANE = 128
# ~4 MiB blocks: measured sweet spot for streaming kernels; keeps
# 2 buffers x (input + output) = 16 MiB resident, under v7x's 32 MiB scoped VMEM.
_TARGET_BLOCK_BYTES = 4 * 1024 * 1024
# Below this, kernel launch + pipeline prologue dwarfs HBM time; let XLA fuse.
_SMALL_FAST_PATH_BYTES = 256 * 1024


def _subtract_const_kernel(const_ref, x_ref, o_ref):
    # const_ref lives in SMEM: a single scalar load per grid step, fully hidden
    # under the DMA-bound loop.  Body is one VPU subtract on a lane-dense tile.
    c = const_ref[0, 0]
    o_ref[...] = (x_ref[...] - c).astype(o_ref.dtype)


def _block_rows(rows: int, itemsize: int) -> int:
    # Dtype-aware sublane granularity: 8 for 4-byte, 16 for bf16, 32 for int8.
    sub = max(8, 32 // itemsize)
    br = _TARGET_BLOCK_BYTES // (_LANE * itemsize)
    br = max(sub, (br // sub) * sub)
    if br >= rows:
        return rows  # full-extent block (allowed even if rows % sub != 0)
    return br


def _subtract_2d(x2d: jax.Array, const_arr: jax.Array) -> jax.Array:
    rows, _ = x2d.shape
    br = _block_rows(rows, x2d.dtype.itemsize)
    grid = (pl.cdiv(rows, br),)
    return pl.pallas_call(
        _subtract_const_kernel,
        out_shape=jax.ShapeDtypeStruct(x2d.shape, x2d.dtype),
        grid=grid,
        in_specs=[
            pl.BlockSpec(memory_space=pltpu.MemorySpace.SMEM),  # (1,1) const
            pl.BlockSpec((br, _LANE), lambda i: (i, 0)),
        ],
        out_specs=pl.BlockSpec((br, _LANE), lambda i: (i, 0)),
        compiler_params=pltpu.CompilerParams(
            # TODO(synk): verify on a v7x trace that "parallel" shards the grid
            # across both TensorCores; if not, switch to CORE_PARALLEL.
            dimension_semantics=("parallel",),
            # 16 MiB resident + headroom; safe on v5e/v6e/v7x.  Could be raised
            # to 64 MiB on v5e/v6e (128 MiB physical VMEM) for 6-8 MiB blocks.
            vmem_limit_bytes=32 * 1024 * 1024,
        ),
    )(const_arr, x2d)


def subtract_const(x: jax.Array, const=0, *, force_kernel: bool = False) -> jax.Array:
    """Pallas equivalent of SubtractConst.forward: returns x - const."""
    dtype = x.dtype
    n = x.size
    if n == 0:
        return x

    # Runtime scalar (not baked into the trace) -> one compile for all consts.
    sdtype = jnp.float32 if jnp.issubdtype(dtype, jnp.floating) else jnp.int32
    const_val = jnp.asarray(const, sdtype)

    # Small-tensor fast path.
    if not force_kernel and n * dtype.itemsize < _SMALL_FAST_PATH_BYTES:
        return (x - const_val).astype(dtype)

    flat = jnp.reshape(x, (n,))
    n_main = (n // _LANE) * _LANE

    parts = []
    if n_main:
        x_main = flat if n_main == n else flat[:n_main]
        x2d = jnp.reshape(x_main, (n_main // _LANE, _LANE))
        const_arr = jnp.reshape(const_val, (1, 1))
        y2d = _subtract_2d(x2d, const_arr)
        parts.append(jnp.reshape(y2d, (n_main,)))
    if n_main != n:
        # <128-element tail handled by XLA instead of padding the whole array.
        parts.append((flat[n_main:] - const_val).astype(dtype))

    y = parts[0] if len(parts) == 1 else jnp.concatenate(parts)
    # TODO(synk): could expose input_output_aliases={1: 0} for donated inputs
    # to halve peak HBM footprint inside larger activation pipelines.
    return jnp.reshape(y, x.shape)


if __name__ == "__main__":
    key = jax.random.PRNGKey(0)

    # SubtractConst(const=3) on the small NCHW-like tensor; force_kernel
    # bypasses the small-tensor fast path so the Pallas kernel actually runs.
    x = jax.random.normal(key, (2, 4, 16, 16), dtype=jnp.float32)
    y = jax.block_until_ready(subtract_const(x, 3, force_kernel=True))
    assert y.shape == x.shape, y.shape
    assert jnp.allclose(y, x - 3), "mismatch vs reference x - 3"

    # Default const=0 (small fast path).
    y0 = jax.block_until_ready(subtract_const(x))
    assert jnp.array_equal(y0, x - 0)

    # Larger tensor takes the kernel path by default; different const reuses
    # the same compiled executable (const is a runtime SMEM scalar).
    xb = jax.random.normal(jax.random.PRNGKey(0), (256, 1024), dtype=jnp.float32)
    yb = jax.block_until_ready(subtract_const(xb, 5))
    assert jnp.allclose(yb, xb - 5)

    # Numel not a multiple of 128: prefix through the kernel, tail via XLA.
    xo = jax.random.normal(jax.random.PRNGKey(0), (513, 257), dtype=jnp.float32)
    yo = jax.block_until_ready(subtract_const(xo, 2, force_kernel=True))
    assert yo.shape == xo.shape
    assert jnp.allclose(yo, xo - 2)

    # bf16 exercises dtype-aware block sizing.
    xh = jax.random.normal(jax.random.PRNGKey(1), (64, 2048), dtype=jnp.bfloat16)
    yh = jax.block_until_ready(subtract_const(xh, 1, force_kernel=True))
    assert jnp.allclose(yh.astype(jnp.float32), xh.astype(jnp.float32) - 1.0,
                        atol=1e-2, rtol=1e-2)

    print("KERNEL_OK")
</pallas_src>

<mosaic_0001>
module attributes {stable_mosaic.version = 11 : i64} {
  func.func @_subtract_const_kernel(%arg0: i32, %arg1: memref<1x1xf32, #tpu.memory_space<smem>>, %arg2: memref<16x128xf32, #tpu.memory_space<vmem>>, %arg3: memref<16x128xf32, #tpu.memory_space<vmem>>) attributes {dimension_semantics = [#tpu.dimension_semantics<parallel>], iteration_bounds = array<i64: 1>, scalar_prefetch = 0 : i64, scratch_operands = 0 : i64, tpu.core_type = #tpu.core_type<tc>, window_params = [{transform_indices = @transform_0, window_bounds = array<i64: 1, 1>}, {transform_indices = @transform_1, window_bounds = array<i64: 16, 128>}, {transform_indices = @transform_2, window_bounds = array<i64: 16, 128>}]} {
    %c0 = arith.constant 0 : index
    %c0_0 = arith.constant 0 : index
    %0 = memref.load %arg1[%c0, %c0_0] : memref<1x1xf32, #tpu.memory_space<smem>>
    %c0_1 = arith.constant 0 : index
    %c0_2 = arith.constant 0 : index
    %1 = vector.load %arg2[%c0_1, %c0_2] : memref<16x128xf32, #tpu.memory_space<vmem>>, vector<16x128xf32>
    %2 = vector.broadcast %0 : f32 to vector<16x128xf32>
    %3 = arith.subf %1, %2 : vector<16x128xf32>
    %c0_3 = arith.constant 0 : index
    %c0_4 = arith.constant 0 : index
    %4 = vector.load %arg3[%c0_3, %c0_4] : memref<16x128xf32, #tpu.memory_space<vmem>>, vector<16x128xf32>
    tpu.vector_store %arg3[%c0_3, %c0_4], %3 {strides = array<i32>} : memref<16x128xf32, #tpu.memory_space<vmem>>, vector<16x128xf32>,
    return
  }
  func.func @transform_0(%arg0: i32) -> (i32, i32) {
    %c0_i32 = arith.constant 0 : i32
    %c0_i32_0 = arith.constant 0 : i32
    %c0_i32_1 = arith.constant 0 : i32
    return %c0_i32, %c0_i32_0 : i32, i32
  }
  func.func @transform_1(%arg0: i32) -> (i32, i32) {
    %c0_i32 = arith.constant 0 : i32
    %c0_i32_0 = arith.constant 0 : i32
    return %arg0, %c0_i32 : i32, i32
  }
  func.func @transform_2(%arg0: i32) -> (i32, i32) {
    %c0_i32 = arith.constant 0 : i32
    %c0_i32_0 = arith.constant 0 : i32
    return %arg0, %c0_i32 : i32, i32
  }
}

</mosaic_0001>

<llo_original>
// kernel: tpu_custom_call.1
$region0: #{tpu_custom_call.1}
  #allocation0 [shape = 'u32[]', space=smem, size = 0x4, offset = 0x4, fixed_abs, tag = 'smem constant byte address 0x4 - core index']
  #allocation1 [shape = 'u32[144,128]{1,0:T(1,128)}', space=vmem, size = 0x12000, scoped, tag = 'internal scratch']
  #allocation2 [shape = 'f32[1,1]{1,0:T(1,128)S(6)}', space=smem, size = 0x200, scoped, tag = 'scoped memory for tpu_custom_call.1']
  %s0 = inlined_call_operand.<no memory space> [shape: f32[1,1], index: 0, kind: input, shape index: {}]
  %s1 = inlined_call_operand.hbm [shape: f32[16,128], index: 1, kind: input, shape index: {}]
  %s2 = inlined_call_operand.hbm [shape: f32[16,128], index: 2, kind: output, shape index: {}]
  %s3 = sld [smem:[#allocation0]]
  $region22: #{tpu_custom_call.1} parent=0
    _
  %s5 = ssub.s32 1, %s3
  %s6 = scalar_select 0, %s5, %s3
  %7 = sst [smem:[#allocation2]] %s0
  $region1: #{tpu_custom_call.1} parent=0
    #allocation3 [shape = 'u8[8192]{0}', space=vmem, size = 0x2000, scoped, tag = 'input window, operand 1, single buffered']
    #allocation4 [shape = 's32[1]{0}', space=sflag, size = 0x4, scoped, tag = 'scoped memory for tpu_custom_call.1']
    #allocation5 [shape = 's32[1]{0}', space=sflag, size = 0x4, scoped, tag = 'scoped memory for tpu_custom_call.1']
    #allocation6 [shape = 'u8[8192]{0}', space=vmem, size = 0x2000, scoped, tag = 'output window, operand 0, single buffered']
    %8 = vsyncpa [#allocation4], 0
    %9 = vsyncpa [#allocation5], 0
    // Predicated region
    $region2: #{tpu_custom_call.1} parent=1 // pred_check
      _
    $region3: #{tpu_custom_call.1} parent=1 // pred_check_branch
      %11 = sbr.rel (0) target = $region5
    $region4: #{tpu_custom_call.1} parent=1 // pred_region
      _
    $region5: #{tpu_custom_call.1} parent=1 // pred_fallthru
      _
    // Predicated region
    $region6: #{tpu_custom_call.1} parent=1 // pred_check
      _
    $region7: #{tpu_custom_call.1} parent=1 // pred_check_branch
      %13 = sbr.rel (0) target = $region9
    $region8: #{tpu_custom_call.1} parent=1 // pred_region
      %s15 = ssub.s32 256, 256
      %16 = vsyncadd [#allocation4], %s15
      %s17 = sshll.u32 [#allocation3], 4
      %s18 = int_to_ptr.vmem [resolvable:$true] %s17
      %23 = dma.hbm_to_vmem [thread:$0]  %s1, 256, %s18, [#allocation4], 128, 128, 8
    $region9: #{tpu_custom_call.1} parent=1 // pred_fallthru
      _
    // Predicated region
    $region10: #{tpu_custom_call.1} parent=1 // pred_check
      _
    $region11: #{tpu_custom_call.1} parent=1 // pred_check_branch
      %25 = sbr.rel (0) target = $region13
    $region12: #{tpu_custom_call.1} parent=1 // pred_region
      %26 = dma.done [#allocation4], 256
    $region13: #{tpu_custom_call.1} parent=1 // pred_fallthru
      _
    %s27 = sld [smem:[#allocation2]]
    %v28 = vld [vmem:[#allocation3] sm:$0xff]
    %v29 = vld [vmem:[#allocation3 + $0x8] sm:$0xff]
    %v30 = vstv %s27
    %v31 = vsub.f32 %v28, %v30
    %v32 = vsub.f32 %v29, %v30
    %33 = vst [vmem:[#allocation6] sm:$0xff] %v31
    %34 = vst [vmem:[#allocation6 + $0x8] sm:$0xff] %v32
    // Predicated region
    $region14: #{tpu_custom_call.1} parent=1 // pred_check
      _
    $region15: #{tpu_custom_call.1} parent=1 // pred_check_branch
      %36 = sbr.rel (0) target = $region17
    $region16: #{tpu_custom_call.1} parent=1 // pred_region
      %s38 = ssub.s32 256, 256
      %39 = vsyncadd [#allocation5], %s38
      %s40 = sshll.u32 [#allocation6], 4
      %s41 = int_to_ptr.vmem [resolvable:$true] %s40
      %46 = dma.vmem_to_hbm [thread:$0]  %s41, 256, %s2, [#allocation5], 128, 128, 8
    $region17: #{tpu_custom_call.1} parent=1 // pred_fallthru
      _
    // Predicated region
    $region18: #{tpu_custom_call.1} parent=1 // pred_check
      _
    $region19: #{tpu_custom_call.1} parent=1 // pred_check_branch
      %48 = sbr.rel (0) target = $region21
    $region20: #{tpu_custom_call.1} parent=1 // pred_region
      %49 = dma.done [#allocation5], 256
    $region21: #{tpu_custom_call.1} parent=1 // pred_fallthru
      _
    %50 = vsyncpa [#allocation4], 1
    %51 = vsyncpa [#allocation5], 1

</llo_original>
